<compile_context>
chip_gen: v7x
topology: tpu7x:2x2x1
jax: 0.10.0
libtpu: 0.0.40
codegen_flags: <defaults>
</compile_context>

<pallas_src>
import functools

import jax
import jax.numpy as jnp
from jax.experimental import pallas as pl
from jax.experimental.pallas import tpu as pltpu

_LANE = 128


def _infer_kernel(x_ref, o_ref, *, num_classes: int):
    """Channel argmax over logits, emitted as float32 indices.

    x_ref: (1, C, TILE) block in VMEM
    o_ref: (1, 1, TILE) block in VMEM
    """
    # Unrolled compare/select over the (small, static) channel axis.
    # Strict '>' keeps the first maximal index, matching torch.argmax.
    best = x_ref[0, 0:1, :]                      # (1, TILE), input dtype
    idx = jnp.zeros(best.shape, jnp.int32)       # int32 accumulator
    for c in range(1, num_classes):
        cand = x_ref[0, c:c + 1, :]
        take = cand > best
        best = jnp.where(take, cand, best)
        idx = jnp.where(take, jnp.int32(c), idx)
    o_ref[0] = idx.astype(jnp.float32)           # single convert at the store


def base_model_infer(x: jax.Array, *, target_tile: int = 1024) -> jax.Array:
    """Pallas equivalent of BaseModel.infer: (N, C, H, W) -> (N, 1, H, W) f32.

    Accepts f32 or bf16 logits (bf16 halves the input DMA bytes; the kernel is
    input-bandwidth bound).
    """
    N, C, H, W = x.shape
    S = H * W

    # Lane-dense spatial tiling: last block dim must be a multiple of 128
    # (or the full axis). Pad spatial up to a multiple of the tile; padded
    # columns are sliced off after the call.
    s_lane = ((S + _LANE - 1) // _LANE) * _LANE
    tile = min(target_tile, s_lane)              # target_tile is a mult of 128
    s_pad = ((s_lane + tile - 1) // tile) * tile

    x2 = x.reshape(N, C, S)
    if s_pad != S:
        x2 = jnp.pad(x2, ((0, 0), (0, 0), (0, s_pad - S)))

    kernel = functools.partial(_infer_kernel, num_classes=C)
    out = pl.pallas_call(
        kernel,
        out_shape=jax.ShapeDtypeStruct((N, 1, s_pad), jnp.float32),
        grid=(N, s_pad // tile),
        in_specs=[pl.BlockSpec((1, C, tile), lambda n, s: (n, 0, s))],
        out_specs=pl.BlockSpec((1, 1, tile), lambda n, s: (n, 0, s)),
        compiler_params=pltpu.CompilerParams(
            dimension_semantics=("parallel", "parallel")),
    )(x2)

    if s_pad != S:
        out = out[:, :, :S]
    return out.reshape(N, 1, H, W)


if __name__ == "__main__":
    key = jax.random.PRNGKey(0)
    # Small shapes consistent with a segmentation-style logits tensor:
    # batch=2, channels(classes)=4, spatial=16x16.
    x = jax.random.normal(key, (2, 4, 16, 16), dtype=jnp.float32)

    out = base_model_infer(x)
    out = jax.block_until_ready(out)

    # Reference check against plain JAX (sigmoid is monotonic, argmax identical).
    ref = jnp.argmax(jax.nn.sigmoid(x), axis=1)[:, None, :, :].astype(jnp.float32)
    assert out.shape == (2, 1, 16, 16)
    assert out.dtype == jnp.float32
    assert bool(jnp.all(out == ref))

    print("KERNEL_OK")
</pallas_src>

<mosaic_0001>
module attributes {stable_mosaic.version = 11 : i64} {
  func.func @_infer_kernel(%arg0: i32, %arg1: i32, %arg2: memref<1x4x256xf32, #tpu.memory_space<vmem>>, %arg3: memref<1x1x256xf32, #tpu.memory_space<vmem>>) attributes {dimension_semantics = [#tpu.dimension_semantics<parallel>, #tpu.dimension_semantics<parallel>], iteration_bounds = array<i64: 2, 1>, scalar_prefetch = 0 : i64, scratch_operands = 0 : i64, tpu.core_type = #tpu.core_type<tc>, window_params = [{transform_indices = @transform_0, window_bounds = array<i64: 1, 4, 256>}, {transform_indices = @transform_1, window_bounds = array<i64: 1, 1, 256>}]} {
    %c0 = arith.constant 0 : index
    %c0_0 = arith.constant 0 : index
    %c0_1 = arith.constant 0 : index
    %0 = vector.load %arg2[%c0, %c0_0, %c0_1] : memref<1x4x256xf32, #tpu.memory_space<vmem>>, vector<1x1x256xf32>
    %1 = vector.shape_cast %0 : vector<1x1x256xf32> to vector<1x256xf32>
    %c0_i32 = arith.constant 0 : i32
    %2 = vector.broadcast %c0_i32 : i32 to vector<1x256xi32>
    %c0_2 = arith.constant 0 : index
    %c1 = arith.constant 1 : index
    %c0_3 = arith.constant 0 : index
    %3 = vector.load %arg2[%c0_2, %c1, %c0_3] : memref<1x4x256xf32, #tpu.memory_space<vmem>>, vector<1x1x256xf32>
    %4 = vector.shape_cast %3 : vector<1x1x256xf32> to vector<1x256xf32>
    %5 = arith.cmpf ogt, %4, %1 : vector<1x256xf32>
    %6 = arith.select %5, %4, %1 : vector<1x256xi1>, vector<1x256xf32>
    %c1_i32 = arith.constant 1 : i32
    %7 = vector.broadcast %c1_i32 : i32 to vector<1x256xi32>
    %8 = arith.select %5, %7, %2 : vector<1x256xi1>, vector<1x256xi32>
    %c0_4 = arith.constant 0 : index
    %c2 = arith.constant 2 : index
    %c0_5 = arith.constant 0 : index
    %9 = vector.load %arg2[%c0_4, %c2, %c0_5] : memref<1x4x256xf32, #tpu.memory_space<vmem>>, vector<1x1x256xf32>
    %10 = vector.shape_cast %9 : vector<1x1x256xf32> to vector<1x256xf32>
    %11 = arith.cmpf ogt, %10, %6 : vector<1x256xf32>
    %12 = arith.select %11, %10, %6 : vector<1x256xi1>, vector<1x256xf32>
    %c2_i32 = arith.constant 2 : i32
    %13 = vector.broadcast %c2_i32 : i32 to vector<1x256xi32>
    %14 = arith.select %11, %13, %8 : vector<1x256xi1>, vector<1x256xi32>
    %c0_6 = arith.constant 0 : index
    %c3 = arith.constant 3 : index
    %c0_7 = arith.constant 0 : index
    %15 = vector.load %arg2[%c0_6, %c3, %c0_7] : memref<1x4x256xf32, #tpu.memory_space<vmem>>, vector<1x1x256xf32>
    %16 = vector.shape_cast %15 : vector<1x1x256xf32> to vector<1x256xf32>
    %17 = arith.cmpf ogt, %16, %12 : vector<1x256xf32>
    %c3_i32 = arith.constant 3 : i32
    %18 = vector.broadcast %c3_i32 : i32 to vector<1x256xi32>
    %19 = arith.select %17, %18, %14 : vector<1x256xi1>, vector<1x256xi32>
    %20 = arith.sitofp %19 : vector<1x256xi32> to vector<1x256xf32>
    %c0_8 = arith.constant 0 : index
    %c0_9 = arith.constant 0 : index
    %c0_10 = arith.constant 0 : index
    %21 = vector.load %arg3[%c0_8, %c0_9, %c0_10] : memref<1x1x256xf32, #tpu.memory_space<vmem>>, vector<1x1x256xf32>
    %22 = vector.shape_cast %21 : vector<1x1x256xf32> to vector<1x256xf32>
    %23 = vector.shape_cast %20 : vector<1x256xf32> to vector<1x1x256xf32>
    tpu.vector_store %arg3[%c0_8, %c0_9, %c0_10], %23 {strides = array<i32>} : memref<1x1x256xf32, #tpu.memory_space<vmem>>, vector<1x1x256xf32>,
    return
  }
  func.func @transform_0(%arg0: i32, %arg1: i32) -> (i32, i32, i32) {
    %c0_i32 = arith.constant 0 : i32
    %c0_i32_0 = arith.constant 0 : i32
    return %arg0, %c0_i32, %arg1 : i32, i32, i32
  }
  func.func @transform_1(%arg0: i32, %arg1: i32) -> (i32, i32, i32) {
    %c0_i32 = arith.constant 0 : i32
    %c0_i32_0 = arith.constant 0 : i32
    return %arg0, %c0_i32, %arg1 : i32, i32, i32
  }
}

</mosaic_0001>

<llo_original>
// kernel: tpu_custom_call.1
$region0: #{tpu_custom_call.1}
  #allocation0 [shape = 'u32[]', space=smem, size = 0x4, offset = 0x4, fixed_abs, tag = 'smem constant byte address 0x4 - core index']
  #allocation1 [shape = 'u32[144,128]{1,0:T(1,128)}', space=vmem, size = 0x12000, scoped, tag = 'internal scratch']
  %s0 = inlined_call_operand.hbm [shape: f32[2,4,256], index: 0, kind: input, shape index: {}]
  %s1 = inlined_call_operand.hbm [shape: f32[2,1,256], index: 1, kind: output, shape index: {}]
  %s2 = sld [smem:[#allocation0]]
  $region41: #{tpu_custom_call.1} parent=0
    _
  %s4 = ssub.s32 1, %s2
  %s5 = scalar_select 0, %s4, %s2
  $region1: #{tpu_custom_call.1} parent=0
    #allocation2 [shape = 'u8[8192]{0}', space=vmem, size = 0x2000, scoped, tag = 'input window, operand 0']
    #allocation3 [shape = 's32[2]{0}', space=sflag, size = 0x8, scoped, tag = 'scoped memory for tpu_custom_call.1']
    #allocation4 [shape = 's32[2]{0}', space=sflag, size = 0x8, scoped, tag = 'scoped memory for tpu_custom_call.1']
    #allocation5 [shape = 'u8[2048]{0}', space=vmem, size = 0x800, scoped, tag = 'output window, operand 0']
    %6 = vsyncpa [#allocation3], 0
    %s7 = scalar_lea.sflag [#allocation3], 1
    %8 = vsyncpa %s7, 0
    %9 = vsyncpa [#allocation4], 0
    %s10 = scalar_lea.sflag [#allocation4], 1
    %11 = vsyncpa %s10, 0
    loop: start=0, step=1, limit=4
    $region2: #{tpu_custom_call.1} parent=1 // loop_pre_header
      _
    $region3: #{tpu_custom_call.1} parent=1 // loop_header
      %s13 = sphi 0, %s17
      %p14 = scmp.ge.s32.totalorder %s13, 4
      %s20 = sphi 0, %s32
      %s21 = sphi 0, %s28
      %s22 = sphi 0, %s20
      %s23 = sphi 0, %s21
      %s24 = sphi 0, %s22
      %s25 = sphi 0, %s23
      %s37 = sphi 0, %s39
      %s40 = sphi 0, %s37
      %s41 = sphi 0, %s40
      %s57 = sphi 0, %s41
      %s65 = sphi 0, %s67
      %s68 = sphi 0, %s65
      %s69 = sphi 0, %s68
      %s85 = sphi 0, %s69
    $region4: #{tpu_custom_call.1} parent=1 // loop_header_branch
      %16 = sbr.rel (%p14) target = $region8
    $region5: #{tpu_custom_call.1} parent=1 // loop_body
      %s18 = ssub.s32 %s13, 1
      %s19 = ssub.s32 %s13, 2
      %s26 = sadd.s32 1, %s21
      %p27 = scmp.ge.s32.totalorder %s26, 1
      %s28 = scalar_select %p27, 0, %s26
      %s29 = sadd.s32 1, %s20
      %s30 = scalar_select %p27, %s29, %s20
      %p31 = scmp.ge.s32.totalorder %s30, 2
      %s32 = scalar_select %p31, 0, %s30
      %s33 = ssub.s32 %s20, %s32
      %s34 = ssub.s32 %s21, %s28
      %s35 = sor.u32 %s33, %s34
      %p36 = scmp.eq.s32.totalorder %s35, 0
      %s38 = sadd.s32 %s37, 1
      %s39 = scalar_select %p36, %s37, %s38
      %p42 = pneg %p36
      %p43 = scmp.eq.s32.totalorder %s13, 1
      %p44 = por %p42, %p43
      %p45 = scmp.ne.s32.totalorder %s37, %s40
      %p46 = scmp.eq.s32.totalorder %s13, 0
      %p47 = por %p45, %p46
      %p48 = scmp.ne.s32.totalorder %s37, %s40
      %p49 = scmp.eq.s32.totalorder %s18, 1
      %p50 = por %p48, %p49
      %p51 = scmp.ne.s32.totalorder %s40, %s41
      %p52 = scmp.eq.s32.totalorder %s18, 0
      %p53 = por %p51, %p52
      %p54 = scmp.ne.s32.totalorder %s40, %s41
      %p55 = scmp.eq.s32.totalorder %s19, 1
      %p56 = por %p54, %p55
      %p58 = scmp.ne.s32.totalorder %s41, %s57
      %p59 = scmp.eq.s32.totalorder %s19, 0
      %p60 = por %p58, %p59
      %s61 = ssub.s32 %s20, %s32
      %s62 = ssub.s32 %s21, %s28
      %s63 = sor.u32 %s61, %s62
      %p64 = scmp.eq.s32.totalorder %s63, 0
      %s66 = sadd.s32 %s65, 1
      %s67 = scalar_select %p64, %s65, %s66
      %p70 = pneg %p64
      %p71 = scmp.eq.s32.totalorder %s13, 1
      %p72 = por %p70, %p71
      %p73 = scmp.ne.s32.totalorder %s65, %s68
      %p74 = scmp.eq.s32.totalorder %s13, 0
      %p75 = por %p73, %p74
      %p76 = scmp.ne.s32.totalorder %s65, %s68
      %p77 = scmp.eq.s32.totalorder %s18, 1
      %p78 = por %p76, %p77
      %p79 = scmp.ne.s32.totalorder %s68, %s69
      %p80 = scmp.eq.s32.totalorder %s18, 0
      %p81 = por %p79, %p80
      %p82 = scmp.ne.s32.totalorder %s68, %s69
      %p83 = scmp.eq.s32.totalorder %s19, 1
      %p84 = por %p82, %p83
      %p86 = scmp.ne.s32.totalorder %s69, %s85
      %p87 = scmp.eq.s32.totalorder %s19, 0
      %p88 = por %p86, %p87
      %p89 = scmp.le.s32.totalorder 1, %s13
      %p90 = scmp.lt.s32.totalorder %s13, 3
      %p91 = pnand %p89, %p90
      %p92 = pneg %p91
      // Predicated region
      $region9: #{tpu_custom_call.1} parent=5 // pred_check
        _
      $region10: #{tpu_custom_call.1} parent=5 // pred_check_branch
        %94 = sbr.rel (%p91) target = $region12
      $region11: #{tpu_custom_call.1} parent=5 // pred_region
        %s95 = ssub.s32 %s13, 1
      $region12: #{tpu_custom_call.1} parent=5 // pred_fallthru
        _
      %p96 = scmp.lt.s32.totalorder %s13, 2
      // Predicated region
      $region13: #{tpu_custom_call.1} parent=5 // pred_check
        %p97 = pneg %p96
      $region14: #{tpu_custom_call.1} parent=5 // pred_check_branch
        %99 = sbr.rel (%p97) target = $region16
      $region15: #{tpu_custom_call.1} parent=5 // pred_region
        // Predicated region
        $region17: #{tpu_custom_call.1} parent=15 // pred_check
          %p100 = pneg %p47
        $region18: #{tpu_custom_call.1} parent=15 // pred_check_branch
          %102 = sbr.rel (%p100) target = $region20
        $region19: #{tpu_custom_call.1} parent=15 // pred_region
          %s103 = sand.u32 %s37, 1
          %s104 = scalar_lea.sflag [#allocation3], %s103
          %s105 = sand.u32 %s37, 1
          %s106 = smul.addr %s105, 8
          %s107 = scalar_lea.vmem [#allocation2], %s106
          %s108 = smul.u32 2, %s21
          %s110 = ssub.s32 128, 128
          %111 = vsyncadd %s104, %s110
          %s112 = smul.addr %s20, 2
          %s113 = sadd.s32 %s108, %s112
          %s114 = smul.addr %s113, 64
          %s115 = scalar_lea.hbm %s0, %s114
          %s117 = sshll.u32 %s107, 4
          %s118 = int_to_ptr.vmem [resolvable:$true] %s117
          %120 = dma.hbm_to_vmem [thread:$0]  %s115, 128, %s118, %s104
        $region20: #{tpu_custom_call.1} parent=15 // pred_fallthru
          _
      $region16: #{tpu_custom_call.1} parent=5 // pred_fallthru
        _
      %p121 = scmp.le.s32.totalorder 1, %s13
      %p122 = scmp.lt.s32.totalorder %s13, 3
      %p123 = pnand %p121, %p122
      %p124 = pneg %p123
      // Predicated region
      $region21: #{tpu_custom_call.1} parent=5 // pred_check
        _
      $region22: #{tpu_custom_call.1} parent=5 // pred_check_branch
        %126 = sbr.rel (%p123) target = $region24
      $region23: #{tpu_custom_call.1} parent=5 // pred_region
        %s127 = ssub.s32 %s13, 1
        %s128 = sand.u32 %s40, 1
        %s129 = scalar_lea.sflag [#allocation3], %s128
        %s130 = sand.u32 %s40, 1
        %s131 = smul.addr %s130, 8
        %s132 = scalar_lea.vmem [#allocation2], %s131
        // Predicated region
        $region25: #{tpu_custom_call.1} parent=23 // pred_check
          %p133 = pneg %p53
        $region26: #{tpu_custom_call.1} parent=23 // pred_check_branch
          %135 = sbr.rel (%p133) target = $region28
        $region27: #{tpu_custom_call.1} parent=23 // pred_region
          %136 = dma.done %s129, 128
        $region28: #{tpu_custom_call.1} parent=23 // pred_fallthru
          _
        %s137 = sand.u32 %s40, 1
        %s138 = scalar_lea.sflag [#allocation3], %s137
        %s139 = sand.u32 %s40, 1
        %s140 = smul.addr %s139, 8
        %s141 = scalar_lea.vmem [#allocation2], %s140
        %p142 = pneg %p53
        %p143 = pneg %p50
        %p144 = pneg %p81
        %p145 = pneg %p78
        %s146 = sand.u32 %s68, 1
        %s147 = scalar_lea.sflag [#allocation4], %s146
        %s148 = sand.u32 %s68, 1
        %s149 = smul.addr %s148, 2
        %s150 = scalar_lea.vmem [#allocation5], %s149
        %s151 = smul.u32 2, %s23
        %s152 = smul.u32 2, %s23
        %v153 = vld [vmem:[%s132] ss:$4 sm:$0x3]
        %s154 = scalar_lea.vmem %s132, 1 [#allocation2]
        %v155 = vld [vmem:[%s154] ss:$4 sm:$0x3]
        %vm156 = vcmp.gt.f32.partialorder %v155, %v153
        %v157 = vsel %vm156, %v155, %v153
        %v158 = vsel %vm156, 1, 0
        %s159 = scalar_lea.vmem %s132, 2 [#allocation2]
        %v160 = vld [vmem:[%s159] ss:$4 sm:$0x3]
        %vm161 = vcmp.gt.f32.partialorder %v160, %v157
        %v162 = vsel %vm161, %v160, %v157
        %v163 = vsel %vm161, 2, %v158
        %s164 = scalar_lea.vmem %s132, 3 [#allocation2]
        %v165 = vld [vmem:[%s164] ss:$4 sm:$0x3]
        %vm166 = vcmp.gt.f32.partialorder %v165, %v162
        %v167 = vsel %vm166, 3, %v163
        %v168 = vcvt.s32.f32 %v167
        %v169 = vlaneseq
        %vm170 = vcmp.ge.s32.totalorder %v169, 0
        %vm171 = vcmp.lt.s32.totalorder %v169, 256
        %vm172 = vmand %vm170, %vm171
        %173 = vst.msk [vmem:[%s150] sm:$0x3] %vm172, %v168
        %s174 = sand.u32 %s68, 1
        %s175 = scalar_lea.sflag [#allocation4], %s174
        %s176 = sand.u32 %s68, 1
        %s177 = smul.addr %s176, 2
        %s178 = scalar_lea.vmem [#allocation5], %s177
        // Predicated region
        $region29: #{tpu_custom_call.1} parent=23 // pred_check
          %p179 = pneg %p78
        $region30: #{tpu_custom_call.1} parent=23 // pred_check_branch
          %181 = sbr.rel (%p179) target = $region32
        $region31: #{tpu_custom_call.1} parent=23 // pred_region
          %s182 = smul.u32 2, %s23
          %s184 = ssub.s32 32, 32
          %185 = vsyncadd %s175, %s184
          %s186 = smul.addr %s22, 2
          %s187 = sadd.s32 %s182, %s186
          %s188 = smul.addr %s187, 16
          %s189 = scalar_lea.hbm %s1, %s188
          %s191 = sshll.u32 %s178, 4
          %s192 = int_to_ptr.vmem [resolvable:$true] %s191
          %194 = dma.vmem_to_hbm [thread:$0]  %s192, 32, %s189, %s175
        $region32: #{tpu_custom_call.1} parent=23 // pred_fallthru
          _
      $region24: #{tpu_custom_call.1} parent=5 // pred_fallthru
        _
      %p195 = scmp.le.s32.totalorder 2, %s13
      // Predicated region
      $region33: #{tpu_custom_call.1} parent=5 // pred_check
        %p196 = pneg %p195
      $region34: #{tpu_custom_call.1} parent=5 // pred_check_branch
        %198 = sbr.rel (%p196) target = $region36
      $region35: #{tpu_custom_call.1} parent=5 // pred_region
        %s199 = ssub.s32 %s13, 2
        // Predicated region
        $region37: #{tpu_custom_call.1} parent=35 // pred_check
          %p200 = pneg %p84
        $region38: #{tpu_custom_call.1} parent=35 // pred_check_branch
          %202 = sbr.rel (%p200) target = $region40
        $region39: #{tpu_custom_call.1} parent=35 // pred_region
          %s203 = sand.u32 %s69, 1
          %s204 = scalar_lea.sflag [#allocation4], %s203
          %s205 = sand.u32 %s69, 1
          %s206 = smul.addr %s205, 2
          %s207 = scalar_lea.vmem [#allocation5], %s206
          %208 = dma.done %s204, 32
        $region40: #{tpu_custom_call.1} parent=35 // pred_fallthru
          _
      $region36: #{tpu_custom_call.1} parent=5 // pred_fallthru
        _
    $region6: #{tpu_custom_call.1} parent=1 // loop_footer
      %s17 = sadd.s32 1, %s13
    $region7: #{tpu_custom_call.1} parent=1 // loop_footer_branch
      %12 = sbr.rel target = $region3
    $region8: #{tpu_custom_call.1} parent=1 // loop_exit
      _
    %209 = vsyncpa [#allocation3], 1
    %s210 = scalar_lea.sflag [#allocation3], 1
    %211 = vsyncpa %s210, 1
    %212 = vsyncpa [#allocation4], 1
    %s213 = scalar_lea.sflag [#allocation4], 1
    %214 = vsyncpa %s213, 1

</llo_original>
